<compile_context>
chip_gen: v7x
topology: tpu7x:2x2x1
jax: 0.10.0
libtpu: 0.0.40
codegen_flags: <defaults>
</compile_context>

<pallas_src>
import functools

import jax
import jax.numpy as jnp
from jax import lax
from jax.experimental import pallas as pl
from jax.experimental.pallas import tpu as pltpu


def _round_up(x, m):
    return ((x + m - 1) // m) * m


def _gelu_exact(x):
    # matches torch.nn.functional.gelu default (erf-based)
    return 0.5 * x * (1.0 + lax.erf(x * (1.0 / jnp.sqrt(2.0)).astype(x.dtype)))


def _pos_conv_kernel(xt_ref, w_ref, b_ref, o_ref, *, block_l, kernel_size,
                     pad_left, conv_dtype, fuse_taps):
    """One (batch, L-tile) output block per grid step.

    xt_ref : (1, 1, TL + K - 1, E_in)  halo tile of the padded input
    w_ref  : (K * E_in, E_out)         conv weight, row = tap * E_in + e_in
    b_ref  : (1, E_out)                conv bias (fp32)
    o_ref  : (1, TL, E_out)            output tile
    """
    K = kernel_size
    TL = block_l
    e_out = o_ref.shape[-1]
    e_in = w_ref.shape[0] // K

    def load_tap(t):
        # Plain VMEM load straight from the ref: no haloed window value is
        # kept live across the matmul.
        tap = xt_ref[0, 0, pl.ds(t, TL), :]
        if tap.dtype != conv_dtype:
            tap = tap.astype(conv_dtype)
        return tap

    if fuse_taps:
        # im2col along lanes -> a single MXU contraction over K*E_in; only one
        # (TL, E_out) fp32 result is drained from the MXU / accumulated.
        if K == 1:
            lhs = load_tap(0)
        else:
            lhs = jnp.concatenate([load_tap(t) for t in range(K)], axis=-1)
        acc = jnp.dot(lhs, w_ref[...], preferred_element_type=jnp.float32)
    else:
        # Fallback when E_in is not a multiple of 128 (lane concat unfriendly).
        acc = jnp.zeros((TL, e_out), jnp.float32)
        for t in range(K):
            acc += jnp.dot(load_tap(t), w_ref[t * e_in:(t + 1) * e_in, :],
                           preferred_element_type=jnp.float32)

    acc += b_ref[...].astype(jnp.float32)
    y = _gelu_exact(acc)

    # Residual: rows [pad_left, pad_left + TL) of the halo tile are exactly the
    # original (un-padded) rows of this output tile.
    resid = xt_ref[0, 0, pl.ds(pad_left, TL), :].astype(jnp.float32)
    o_ref[0] = (resid + y).astype(o_ref.dtype)


def hubert_encoder_positional_embedding(x, weight_v, weight_g, bias, *,
                                        block_l=None, conv_dtype=None):
    """x: (B, L, E);  weight_v: (E, E, K);  weight_g: (1, 1, K);  bias: (E,)."""
    B, L, E = x.shape
    E_out, E_in, K = weight_v.shape
    assert E_out == E and E_in == E, "groups != 1 is not supported"

    if conv_dtype is None:
        conv_dtype = x.dtype   # pass bf16 here for extra MXU throughput on fp32 models

    # --- weight-norm reparameterization (dim=2): w = g * v / ||v||_(out,in) ---
    v32 = weight_v.astype(jnp.float32)
    v_norm = jnp.sqrt(jnp.sum(v32 * v32, axis=(0, 1), keepdims=True))
    w32 = weight_g.astype(jnp.float32) * v32 / v_norm              # (E_out, E_in, K)
    # (E_out, E_in, K) -> (K, E_in, E_out) -> (K*E_in, E_out); tap-major rows
    # match the lane order of the in-kernel im2col concat.
    w_flat = jnp.transpose(w32, (2, 1, 0)).reshape(K * E_in, E_out).astype(conv_dtype)
    bias2 = bias.reshape(1, E_out).astype(jnp.float32)

    padding = K - 1
    pad_right = padding // 2
    pad_left = padding - pad_right

    # --- L tiling: multiple of 8 sublanes, capped block size ---
    if block_l is None:
        block_l = 256                        # one full MXU pass on v6e/v7x
    TL = min(_round_up(block_l, 8), _round_up(L, 8))
    NT = pl.cdiv(L, TL)
    TLH = TL + K - 1
    # Right-pad so every halo tile is in-bounds; the trailing partial output
    # tile (if any) is masked by Pallas on store.
    Lp = NT * TL + K - 1
    x_pad = jnp.pad(x, ((0, 0), (pad_left, Lp - L - pad_left), (0, 0)))
    # Host-side halo tiling: bounds the per-step activation VMEM footprint to
    # O(TL*E), independent of sequence length.
    x_tiles = jnp.stack([x_pad[:, i * TL:i * TL + TLH, :] for i in range(NT)],
                        axis=1)                                   # (B, NT, TLH, E)

    fuse_taps = (E_in % 128 == 0)

    kernel = functools.partial(_pos_conv_kernel, block_l=TL, kernel_size=K,
                               pad_left=pad_left, conv_dtype=conv_dtype,
                               fuse_taps=fuse_taps)

    return pl.pallas_call(
        kernel,
        out_shape=jax.ShapeDtypeStruct((B, L, E_out), x.dtype),
        grid_spec=pltpu.PrefetchScalarGridSpec(
            num_scalar_prefetch=0,
            grid=(B, NT),
            in_specs=[
                # One halo tile per grid step (standard double-buffered pipeline;
                # last two dims equal the full array dims, so no (8,128) issue).
                pl.BlockSpec((1, 1, TLH, E_in), lambda b, l: (b, l, 0, 0)),
                # Grid-invariant weight / bias (fetched once for the whole grid).
                pl.BlockSpec((K * E_in, E_out), lambda b, l: (0, 0)),
                pl.BlockSpec((1, E_out), lambda b, l: (0, 0)),
            ],
            out_specs=pl.BlockSpec((1, TL, E_out), lambda b, l: (b, l, 0)),
        ),
        compiler_params=pltpu.CompilerParams(
            # Every output tile is independent -> both axes parallel (feeds
            # both v7x TensorCores even when B == 1 and NT >= 2).
            dimension_semantics=("parallel", "parallel"),
            # Footprint is bounded (O(TL*E) activations + (K*E,E) weight);
            # 48 MiB leaves headroom under v7x's 64 MiB physical VMEM while
            # giving slack for fp32 / larger K on v5e/v6e.
            vmem_limit_bytes=48 * 1024 * 1024,
        ),
    )(x_tiles, w_flat, bias2)


def _reference(x, weight_v, weight_g, bias):
    """Pure-JAX reference matching the PyTorch forward (eval mode)."""
    E_out, E_in, K = weight_v.shape
    v_norm = jnp.sqrt(jnp.sum(weight_v ** 2, axis=(0, 1), keepdims=True))
    weight = weight_g * weight_v / v_norm                          # (E_out, E_in, K)
    padding = K - 1
    pad_right = padding // 2
    pad_left = padding - pad_right
    x_pad = jnp.pad(x, ((0, 0), (pad_left, pad_right), (0, 0)))
    L = x.shape[1]
    taps = jnp.stack([x_pad[:, t:t + L, :] for t in range(K)], axis=0)  # (K,B,L,Ein)
    y = jnp.einsum("kble,oek->blo", taps, weight) + bias
    y = 0.5 * y * (1.0 + lax.erf(y / jnp.sqrt(2.0)))
    return x + y


if __name__ == "__main__":
    def run_case(key, B, L, E, K, block_l):
        kx, kv, kg, kb = jax.random.split(key, 4)
        x = jax.random.normal(kx, (B, L, E), dtype=jnp.float32)
        weight_v = jax.random.normal(kv, (E, E, K), dtype=jnp.float32) * 0.05
        weight_g = jax.random.normal(kg, (1, 1, K), dtype=jnp.float32) * 0.5 + 1.0
        bias = jax.random.normal(kb, (E,), dtype=jnp.float32) * 0.01

        out = hubert_encoder_positional_embedding(
            x, weight_v, weight_g, bias, block_l=block_l)
        out = jax.block_until_ready(out)

        ref = _reference(x, weight_v, weight_g, bias)
        assert out.shape == (B, L, E)
        err = float(jnp.max(jnp.abs(out - ref)))
        assert jnp.allclose(out, ref, atol=5e-5, rtol=5e-5), \
            f"mismatch vs reference (max abs err {err})"

    key = jax.random.PRNGKey(0)
    k1, k2, k3 = jax.random.split(key, 3)
    # L divisible by the tile, odd kernel size: 2 batch x 3 L-tiles.
    run_case(k1, B=2, L=48, E=128, K=3, block_l=16)
    # Non-divisible L (trailing partial tile is masked) + even kernel
    # (asymmetric SamePad split), B=1 to exercise the second parallel axis.
    run_case(k2, B=1, L=40, E=128, K=4, block_l=16)
    # Default block_l (single tile covering L), larger E and odd K=5.
    run_case(k3, B=2, L=40, E=256, K=5, block_l=None)

    print("KERNEL_OK")
</pallas_src>

<mosaic_0001>
module attributes {stable_mosaic.version = 11 : i64} {
  func.func @_pos_conv_kernel(%arg0: i32, %arg1: i32, %arg2: memref<1x1x18x128xf32, #tpu.memory_space<vmem>>, %arg3: memref<384x128xf32, #tpu.memory_space<vmem>>, %arg4: memref<1x128xf32, #tpu.memory_space<vmem>>, %arg5: memref<1x16x128xf32, #tpu.memory_space<vmem>>) attributes {dimension_semantics = [#tpu.dimension_semantics<parallel>, #tpu.dimension_semantics<parallel>], iteration_bounds = array<i64: 2, 3>, scalar_prefetch = 0 : i64, scratch_operands = 0 : i64, tpu.core_type = #tpu.core_type<tc>, window_params = [{transform_indices = @transform_0, window_bounds = array<i64: 1, 1, 18, 128>}, {pipeline_mode = #tpu.pipeline_mode<synchronous>, transform_indices = @transform_1, window_bounds = array<i64: 384, 128>}, {pipeline_mode = #tpu.pipeline_mode<synchronous>, transform_indices = @transform_2, window_bounds = array<i64: 1, 128>}, {transform_indices = @transform_3, window_bounds = array<i64: 1, 16, 128>}]} {
    %c0 = arith.constant 0 : index
    %c0_0 = arith.constant 0 : index
    %c0_1 = arith.constant 0 : index
    %c0_2 = arith.constant 0 : index
    %0 = vector.load %arg2[%c0, %c0_0, %c0_1, %c0_2] : memref<1x1x18x128xf32, #tpu.memory_space<vmem>>, vector<1x1x16x128xf32>
    %1 = vector.shape_cast %0 : vector<1x1x16x128xf32> to vector<16x128xf32>
    %c0_3 = arith.constant 0 : index
    %c0_4 = arith.constant 0 : index
    %c1 = arith.constant 1 : index
    %c0_5 = arith.constant 0 : index
    %2 = vector.load %arg2[%c0_3, %c0_4, %c1, %c0_5] : memref<1x1x18x128xf32, #tpu.memory_space<vmem>>, vector<1x1x16x128xf32>
    %3 = vector.shape_cast %2 : vector<1x1x16x128xf32> to vector<16x128xf32>
    %c0_6 = arith.constant 0 : index
    %c0_7 = arith.constant 0 : index
    %c2 = arith.constant 2 : index
    %c0_8 = arith.constant 0 : index
    %4 = vector.load %arg2[%c0_6, %c0_7, %c2, %c0_8] : memref<1x1x18x128xf32, #tpu.memory_space<vmem>>, vector<1x1x16x128xf32>
    %5 = vector.shape_cast %4 : vector<1x1x16x128xf32> to vector<16x128xf32>
    %6 = tpu.concatenate %1, %3, %5 in 1 : vector<16x128xf32>, vector<16x128xf32>, vector<16x128xf32> -> vector<16x384xf32>
    %c0_9 = arith.constant 0 : index
    %c0_10 = arith.constant 0 : index
    %7 = vector.load %arg3[%c0_9, %c0_10] : memref<384x128xf32, #tpu.memory_space<vmem>>, vector<384x128xf32>
    %cst = arith.constant dense<0.000000e+00> : vector<16x128xf32>
    %8 = tpu.matmul %6, %7, %cst {dimension_numbers = #tpu.dot_dimension_numbers<[1], [0], [0], [1], [0, 0, 1, 1], [], []>} : vector<16x384xf32>, vector<384x128xf32>, vector<16x128xf32> -> vector<16x128xf32>
    %c0_11 = arith.constant 0 : index
    %c0_12 = arith.constant 0 : index
    %9 = vector.load %arg4[%c0_11, %c0_12] : memref<1x128xf32, #tpu.memory_space<vmem>>, vector<1x128xf32>
    %10 = vector.broadcast %9 : vector<1x128xf32> to vector<16x128xf32>
    %11 = arith.addf %8, %10 : vector<16x128xf32>
    %cst_13 = arith.constant 5.000000e-01 : f32
    %12 = vector.broadcast %cst_13 : f32 to vector<16x128xf32>
    %13 = arith.mulf %12, %11 : vector<16x128xf32>
    %cst_14 = arith.constant 2.000000e+00 : f32
    %14 = math.sqrt %cst_14 : f32
    %cst_15 = arith.constant 1.000000e+00 : f32
    %15 = arith.divf %cst_15, %14 : f32
    %16 = vector.broadcast %15 : f32 to vector<16x128xf32>
    %17 = arith.mulf %11, %16 : vector<16x128xf32>
    %18 = math.erf %17 : vector<16x128xf32>
    %cst_16 = arith.constant 1.000000e+00 : f32
    %19 = vector.broadcast %cst_16 : f32 to vector<16x128xf32>
    %20 = arith.addf %19, %18 : vector<16x128xf32>
    %21 = arith.mulf %13, %20 : vector<16x128xf32>
    %c0_17 = arith.constant 0 : index
    %c0_18 = arith.constant 0 : index
    %c1_19 = arith.constant 1 : index
    %c0_20 = arith.constant 0 : index
    %22 = vector.load %arg2[%c0_17, %c0_18, %c1_19, %c0_20] : memref<1x1x18x128xf32, #tpu.memory_space<vmem>>, vector<1x1x16x128xf32>
    %23 = vector.shape_cast %22 : vector<1x1x16x128xf32> to vector<16x128xf32>
    %24 = arith.addf %23, %21 : vector<16x128xf32>
    %c0_21 = arith.constant 0 : index
    %c0_22 = arith.constant 0 : index
    %c0_23 = arith.constant 0 : index
    %25 = vector.load %arg5[%c0_21, %c0_22, %c0_23] : memref<1x16x128xf32, #tpu.memory_space<vmem>>, vector<1x16x128xf32>
    %26 = vector.shape_cast %25 : vector<1x16x128xf32> to vector<16x128xf32>
    %27 = vector.shape_cast %24 : vector<16x128xf32> to vector<1x16x128xf32>
    tpu.vector_store %arg5[%c0_21, %c0_22, %c0_23], %27 {strides = array<i32>} : memref<1x16x128xf32, #tpu.memory_space<vmem>>, vector<1x16x128xf32>,
    return
  }
  func.func @transform_0(%arg0: i32, %arg1: i32) -> (i32, i32, i32, i32) {
    %c0_i32 = arith.constant 0 : i32
    %c0_i32_0 = arith.constant 0 : i32
    %c0_i32_1 = arith.constant 0 : i32
    return %arg0, %arg1, %c0_i32, %c0_i32_0 : i32, i32, i32, i32
  }
  func.func @transform_1(%arg0: i32, %arg1: i32) -> (i32, i32) {
    %c0_i32 = arith.constant 0 : i32
    %c0_i32_0 = arith.constant 0 : i32
    %c0_i32_1 = arith.constant 0 : i32
    return %c0_i32, %c0_i32_0 : i32, i32
  }
  func.func @transform_2(%arg0: i32, %arg1: i32) -> (i32, i32) {
    %c0_i32 = arith.constant 0 : i32
    %c0_i32_0 = arith.constant 0 : i32
    %c0_i32_1 = arith.constant 0 : i32
    return %c0_i32, %c0_i32_0 : i32, i32
  }
  func.func @transform_3(%arg0: i32, %arg1: i32) -> (i32, i32, i32) {
    %c0_i32 = arith.constant 0 : i32
    %c0_i32_0 = arith.constant 0 : i32
    return %arg0, %arg1, %c0_i32 : i32, i32, i32
  }
}

</mosaic_0001>

<llo_original>
// kernel: tpu_custom_call.1
$region0: #{tpu_custom_call.1}
  #allocation0 [shape = 'u32[]', space=smem, size = 0x4, offset = 0x4, fixed_abs, tag = 'smem constant byte address 0x4 - core index']
  #allocation1 [shape = 'u32[144,128]{1,0:T(1,128)}', space=vmem, size = 0x12000, scoped, tag = 'internal scratch']
  %s0 = inlined_call_operand.vmem [shape: f32[2,3,18,128], index: 0, kind: input, shape index: {}]
  %s1 = inlined_call_operand.hbm [shape: f32[384,128], index: 1, kind: input, shape index: {}]
  %s2 = inlined_call_operand.vmem [shape: f32[1,128], index: 2, kind: input, shape index: {}]
  %s3 = inlined_call_operand.hbm [shape: f32[2,48,128], index: 3, kind: output, shape index: {}]
  %s4 = sld [smem:[#allocation0]]
  $region49: #{tpu_custom_call.1} parent=0
    _
  %s6 = ssub.s32 1, %s4
  %s7 = scalar_select 0, %s6, %s4
  $region1: #{tpu_custom_call.1} parent=0
    #allocation2 [shape = 'u8[196608]{0}', space=vmem, size = 0x30000, scoped, tag = 'input window, operand 1, single buffered']
    #allocation3 [shape = 's32[2]{0}', space=sflag, size = 0x8, scoped, tag = 'scoped memory for tpu_custom_call.1']
    #allocation4 [shape = 's32[2]{0}', space=sflag, size = 0x8, scoped, tag = 'scoped memory for tpu_custom_call.1']
    #allocation5 [shape = 'u8[16384]{0}', space=vmem, size = 0x4000, scoped, tag = 'output window, operand 0']
    %8 = vsyncpa [#allocation3], 0
    %9 = vsyncpa [#allocation4], 0
    %s10 = scalar_lea.sflag [#allocation4], 1
    %11 = vsyncpa %s10, 0
    loop: start=0, step=1, limit=8
    $region2: #{tpu_custom_call.1} parent=1 // loop_pre_header
      _
    $region3: #{tpu_custom_call.1} parent=1 // loop_header
      %s13 = sphi 0, %s17
      %p14 = scmp.ge.s32.totalorder %s13, 8
      %s20 = sphi 0, %s32
      %s21 = sphi 0, %s28
      %s22 = sphi 0, %s20
      %s23 = sphi 0, %s21
      %s24 = sphi 0, %s22
      %s25 = sphi 0, %s23
      %s37 = sphi 0, %s39
      %s40 = sphi 0, %s37
      %s41 = sphi 0, %s40
      %s57 = sphi 0, %s41
      %s61 = sphi 0, %s61
      %s63 = sphi 0, %s61
      %s64 = sphi 0, %s63
      %s78 = sphi 0, %s64
      %s82 = sphi 0, %s82
      %s84 = sphi 0, %s82
      %s85 = sphi 0, %s84
      %s99 = sphi 0, %s85
      %s107 = sphi 0, %s109
      %s110 = sphi 0, %s107
      %s111 = sphi 0, %s110
      %s127 = sphi 0, %s111
    $region4: #{tpu_custom_call.1} parent=1 // loop_header_branch
      %16 = sbr.rel (%p14) target = $region8
    $region5: #{tpu_custom_call.1} parent=1 // loop_body
      %s18 = ssub.s32 %s13, 1
      %s19 = ssub.s32 %s13, 2
      %s26 = sadd.s32 1, %s21
      %p27 = scmp.ge.s32.totalorder %s26, 3
      %s28 = scalar_select %p27, 0, %s26
      %s29 = sadd.s32 1, %s20
      %s30 = scalar_select %p27, %s29, %s20
      %p31 = scmp.ge.s32.totalorder %s30, 2
      %s32 = scalar_select %p31, 0, %s30
      %s33 = ssub.s32 %s20, %s32
      %s34 = ssub.s32 %s21, %s28
      %s35 = sor.u32 %s33, %s34
      %p36 = scmp.eq.s32.totalorder %s35, 0
      %s38 = sadd.s32 %s37, 1
      %s39 = scalar_select %p36, %s37, %s38
      %p42 = pneg %p36
      %p43 = scmp.eq.s32.totalorder %s13, 5
      %p44 = por %p42, %p43
      %p45 = scmp.ne.s32.totalorder %s37, %s40
      %p46 = scmp.eq.s32.totalorder %s13, 0
      %p47 = por %p45, %p46
      %p48 = scmp.ne.s32.totalorder %s37, %s40
      %p49 = scmp.eq.s32.totalorder %s18, 5
      %p50 = por %p48, %p49
      %p51 = scmp.ne.s32.totalorder %s40, %s41
      %p52 = scmp.eq.s32.totalorder %s18, 0
      %p53 = por %p51, %p52
      %p54 = scmp.ne.s32.totalorder %s40, %s41
      %p55 = scmp.eq.s32.totalorder %s19, 5
      %p56 = por %p54, %p55
      %p58 = scmp.ne.s32.totalorder %s41, %s57
      %p59 = scmp.eq.s32.totalorder %s19, 0
      %p60 = por %p58, %p59
      %s62 = sadd.s32 %s61, 1
      %p65 = scmp.eq.s32.totalorder %s13, 5
      %p66 = scmp.ne.s32.totalorder %s61, %s63
      %p67 = scmp.eq.s32.totalorder %s13, 0
      %p68 = por %p66, %p67
      %p69 = scmp.ne.s32.totalorder %s61, %s63
      %p70 = scmp.eq.s32.totalorder %s18, 5
      %p71 = por %p69, %p70
      %p72 = scmp.ne.s32.totalorder %s63, %s64
      %p73 = scmp.eq.s32.totalorder %s18, 0
      %p74 = por %p72, %p73
      %p75 = scmp.ne.s32.totalorder %s63, %s64
      %p76 = scmp.eq.s32.totalorder %s19, 5
      %p77 = por %p75, %p76
      %p79 = scmp.ne.s32.totalorder %s64, %s78
      %p80 = scmp.eq.s32.totalorder %s19, 0
      %p81 = por %p79, %p80
      %s83 = sadd.s32 %s82, 1
      %p86 = scmp.eq.s32.totalorder %s13, 5
      %p87 = scmp.ne.s32.totalorder %s82, %s84
      %p88 = scmp.eq.s32.totalorder %s13, 0
      %p89 = por %p87, %p88
      %p90 = scmp.ne.s32.totalorder %s82, %s84
      %p91 = scmp.eq.s32.totalorder %s18, 5
      %p92 = por %p90, %p91
      %p93 = scmp.ne.s32.totalorder %s84, %s85
      %p94 = scmp.eq.s32.totalorder %s18, 0
      %p95 = por %p93, %p94
      %p96 = scmp.ne.s32.totalorder %s84, %s85
      %p97 = scmp.eq.s32.totalorder %s19, 5
      %p98 = por %p96, %p97
      %p100 = scmp.ne.s32.totalorder %s85, %s99
      %p101 = scmp.eq.s32.totalorder %s19, 0
      %p102 = por %p100, %p101
      %s103 = ssub.s32 %s20, %s32
      %s104 = ssub.s32 %s21, %s28
      %s105 = sor.u32 %s103, %s104
      %p106 = scmp.eq.s32.totalorder %s105, 0
      %s108 = sadd.s32 %s107, 1
      %s109 = scalar_select %p106, %s107, %s108
      %p112 = pneg %p106
      %p113 = scmp.eq.s32.totalorder %s13, 5
      %p114 = por %p112, %p113
      %p115 = scmp.ne.s32.totalorder %s107, %s110
      %p116 = scmp.eq.s32.totalorder %s13, 0
      %p117 = por %p115, %p116
      %p118 = scmp.ne.s32.totalorder %s107, %s110
      %p119 = scmp.eq.s32.totalorder %s18, 5
      %p120 = por %p118, %p119
      %p121 = scmp.ne.s32.totalorder %s110, %s111
      %p122 = scmp.eq.s32.totalorder %s18, 0
      %p123 = por %p121, %p122
      %p124 = scmp.ne.s32.totalorder %s110, %s111
      %p125 = scmp.eq.s32.totalorder %s19, 5
      %p126 = por %p124, %p125
      %p128 = scmp.ne.s32.totalorder %s111, %s127
      %p129 = scmp.eq.s32.totalorder %s19, 0
      %p130 = por %p128, %p129
      %p131 = scmp.le.s32.totalorder 1, %s13
      %p132 = scmp.lt.s32.totalorder %s13, 7
      %p133 = pnand %p131, %p132
      %p134 = pneg %p133
      // Predicated region
      $region9: #{tpu_custom_call.1} parent=5 // pred_check
        _
      $region10: #{tpu_custom_call.1} parent=5 // pred_check_branch
        %136 = sbr.rel (%p133) target = $region12
      $region11: #{tpu_custom_call.1} parent=5 // pred_region
        %s137 = ssub.s32 %s13, 1
        // Predicated region
        $region13: #{tpu_custom_call.1} parent=11 // pred_check
          %p138 = pneg %p74
        $region14: #{tpu_custom_call.1} parent=11 // pred_check_branch
          %140 = sbr.rel (%p138) target = $region16
        $region15: #{tpu_custom_call.1} parent=11 // pred_region
          %s142 = ssub.s32 6144, 6144
          %143 = vsyncadd [#allocation3], %s142
          %s144 = sshll.u32 [#allocation2], 4
          %s145 = int_to_ptr.vmem [resolvable:$true] %s144
          %150 = dma.hbm_to_vmem [thread:$0]  %s1, 6144, %s145, [#allocation3], 128, 128, 8
        $region16: #{tpu_custom_call.1} parent=11 // pred_fallthru
          _
        // Predicated region
        $region17: #{tpu_custom_call.1} parent=11 // pred_check
          %p151 = pneg %p95
        $region18: #{tpu_custom_call.1} parent=11 // pred_check_branch
          %153 = sbr.rel (%p151) target = $region20
        $region19: #{tpu_custom_call.1} parent=11 // pred_region
          _
        $region20: #{tpu_custom_call.1} parent=11 // pred_fallthru
          _
      $region12: #{tpu_custom_call.1} parent=5 // pred_fallthru
        _
      %p154 = scmp.lt.s32.totalorder %s13, 6
      // Predicated region
      $region21: #{tpu_custom_call.1} parent=5 // pred_check
        %p155 = pneg %p154
      $region22: #{tpu_custom_call.1} parent=5 // pred_check_branch
        %157 = sbr.rel (%p155) target = $region24
      $region23: #{tpu_custom_call.1} parent=5 // pred_region
        // Predicated region
        $region25: #{tpu_custom_call.1} parent=23 // pred_check
          %p158 = pneg %p47
        $region26: #{tpu_custom_call.1} parent=23 // pred_check_branch
          %160 = sbr.rel (%p158) target = $region28
        $region27: #{tpu_custom_call.1} parent=23 // pred_region
          %p161 = scmp.lt.s32.totalorder %s20, 1
          %s162 = scalar_select %p161, %s20, 1
          %p163 = scmp.lt.s32.totalorder %s21, 2
          %s164 = scalar_select %p163, %s21, 2
          %s165 = smul.addr %s164, 3
          %s166 = smul.addr %s162, 9
          %s167 = sadd.s32 %s165, %s166
          %s168 = smul.addr %s167, 8
          %s169 = scalar_lea.vmem %s0, %s168
        $region28: #{tpu_custom_call.1} parent=23 // pred_fallthru
          _
      $region24: #{tpu_custom_call.1} parent=5 // pred_fallthru
        _
      %p170 = scmp.le.s32.totalorder 1, %s13
      %p171 = scmp.lt.s32.totalorder %s13, 7
      %p172 = pnand %p170, %p171
      %p173 = pneg %p172
      // Predicated region
      $region29: #{tpu_custom_call.1} parent=5 // pred_check
        _
      $region30: #{tpu_custom_call.1} parent=5 // pred_check_branch
        %175 = sbr.rel (%p172) target = $region32
      $region31: #{tpu_custom_call.1} parent=5 // pred_region
        %s176 = ssub.s32 %s13, 1
        // Predicated region
        $region33: #{tpu_custom_call.1} parent=31 // pred_check
          %p177 = pneg %p74
        $region34: #{tpu_custom_call.1} parent=31 // pred_check_branch
          %179 = sbr.rel (%p177) target = $region36
        $region35: #{tpu_custom_call.1} parent=31 // pred_region
          %180 = dma.done [#allocation3], 6144
        $region36: #{tpu_custom_call.1} parent=31 // pred_fallthru
          _
        %p181 = scmp.lt.s32.totalorder %s22, 1
        %s182 = scalar_select %p181, %s22, 1
        %p183 = scmp.lt.s32.totalorder %s23, 2
        %s184 = scalar_select %p183, %s23, 2
        %s185 = smul.addr %s184, 3
        %s186 = smul.addr %s182, 9
        %s187 = sadd.s32 %s185, %s186
        %s188 = smul.addr %s187, 8
        %s189 = scalar_lea.vmem %s0, %s188
        %p190 = pneg %p53
        %p191 = pneg %p50
        %p192 = pneg %p74
        %p193 = pneg %p71
        %p194 = pneg %p95
        %p195 = pneg %p92
        %p196 = pneg %p123
        %p197 = pneg %p120
        %s198 = sand.u32 %s110, 1
        %s199 = scalar_lea.sflag [#allocation4], %s198
        %s200 = sand.u32 %s110, 1
        %s201 = smul.addr %s200, 16
        %s202 = scalar_lea.vmem [#allocation5], %s201
        %p203 = scmp.lt.s32.totalorder %s22, 1
        %s204 = scalar_select %p203, %s22, 1
        %p205 = scmp.lt.s32.totalorder %s23, 2
        %s206 = scalar_select %p205, %s23, 2
        %s207 = smul.addr %s206, 3
        %s208 = smul.addr %s204, 9
        %s209 = sadd.s32 %s207, %s208
        %s210 = smul.addr %s209, 8
        %s211 = scalar_lea.vmem %s0, %s210
        %s212 = smul.u32 2, %s23
        %v213 = vld [vmem:[%s211] sm:$0xff]
        %v214 = vld [vmem:[%s211 + $0x8] sm:$0xff]
        %v215 = vld [vmem:[%s211 + $0x1] sm:$0xff]
        %v216 = vld [vmem:[%s211 + $0x9] sm:$0xff]
        %v217 = vld [vmem:[%s211 + $0x2] sm:$0xff]
        %v218 = vld [vmem:[%s211 + $0xa] sm:$0xff]
        %v219 = vld [vmem:[#allocation2] sm:$0xff]
        %v220 = vld [vmem:[#allocation2 + $0x8] sm:$0xff]
        %v221 = vld [vmem:[#allocation2 + $0x10] sm:$0xff]
        %v222 = vld [vmem:[#allocation2 + $0x18] sm:$0xff]
        %v223 = vld [vmem:[#allocation2 + $0x20] sm:$0xff]
        %v224 = vld [vmem:[#allocation2 + $0x28] sm:$0xff]
        %v225 = vld [vmem:[#allocation2 + $0x30] sm:$0xff]
        %v226 = vld [vmem:[#allocation2 + $0x38] sm:$0xff]
        %v227 = vld [vmem:[#allocation2 + $0x40] sm:$0xff]
        %v228 = vld [vmem:[#allocation2 + $0x48] sm:$0xff]
        %v229 = vld [vmem:[#allocation2 + $0x50] sm:$0xff]
        %v230 = vld [vmem:[#allocation2 + $0x58] sm:$0xff]
        %v231 = vld [vmem:[#allocation2 + $0x60] sm:$0xff]
        %v232 = vld [vmem:[#allocation2 + $0x68] sm:$0xff]
        %v233 = vld [vmem:[#allocation2 + $0x70] sm:$0xff]
        %v234 = vld [vmem:[#allocation2 + $0x78] sm:$0xff]
        %v235 = vld [vmem:[#allocation2 + $0x80] sm:$0xff]
        %v236 = vld [vmem:[#allocation2 + $0x88] sm:$0xff]
        %v237 = vld [vmem:[#allocation2 + $0x90] sm:$0xff]
        %v238 = vld [vmem:[#allocation2 + $0x98] sm:$0xff]
        %v239 = vld [vmem:[#allocation2 + $0xa0] sm:$0xff]
        %v240 = vld [vmem:[#allocation2 + $0xa8] sm:$0xff]
        %v241 = vld [vmem:[#allocation2 + $0xb0] sm:$0xff]
        %v242 = vld [vmem:[#allocation2 + $0xb8] sm:$0xff]
        %v243 = vld [vmem:[#allocation2 + $0xc0] sm:$0xff]
        %v244 = vld [vmem:[#allocation2 + $0xc8] sm:$0xff]
        %v245 = vld [vmem:[#allocation2 + $0xd0] sm:$0xff]
        %v246 = vld [vmem:[#allocation2 + $0xd8] sm:$0xff]
        %v247 = vld [vmem:[#allocation2 + $0xe0] sm:$0xff]
        %v248 = vld [vmem:[#allocation2 + $0xe8] sm:$0xff]
        %v249 = vld [vmem:[#allocation2 + $0xf0] sm:$0xff]
        %v250 = vld [vmem:[#allocation2 + $0xf8] sm:$0xff]
        %v251 = vld [vmem:[#allocation2 + $0x100] sm:$0xff]
        %v252 = vld [vmem:[#allocation2 + $0x108] sm:$0xff]
        %v253 = vld [vmem:[#allocation2 + $0x110] sm:$0xff]
        %v254 = vld [vmem:[#allocation2 + $0x118] sm:$0xff]
        %v255 = vld [vmem:[#allocation2 + $0x120] sm:$0xff]
        %v256 = vld [vmem:[#allocation2 + $0x128] sm:$0xff]
        %v257 = vld [vmem:[#allocation2 + $0x130] sm:$0xff]
        %v258 = vld [vmem:[#allocation2 + $0x138] sm:$0xff]
        %v259 = vld [vmem:[#allocation2 + $0x140] sm:$0xff]
        %v260 = vld [vmem:[#allocation2 + $0x148] sm:$0xff]
        %v261 = vld [vmem:[#allocation2 + $0x150] sm:$0xff]
        %v262 = vld [vmem:[#allocation2 + $0x158] sm:$0xff]
        %v263 = vld [vmem:[#allocation2 + $0x160] sm:$0xff]
        %v264 = vld [vmem:[#allocation2 + $0x168] sm:$0xff]
        %v265 = vld [vmem:[#allocation2 + $0x170] sm:$0xff]
        %v266 = vld [vmem:[#allocation2 + $0x178] sm:$0xff]
        %v267 = vld [vmem:[%s2] sm:$0x1]
        %v269 = vlaneseq
        %v270 = vshrl.u32 %v269, 7
        %v271 = vsub.s32 0, %v270
        %v272 = vrot.slane %v267, %v271
        %274 = vmatprep.subr.mxu0 0.0
        %275 = vmatpush1.msra.mxu0 %v219
        %276 = vmatprep.subr.mxu0 0.0
        %277 = vmatpush1.msra.mxu0 %v220
        %278 = vmatprep.subr.mxu0 0.0
        %279 = vmatpush1.msra.mxu0 %v221
        %280 = vmatprep.subr.mxu0 0.0
        %281 = vmatpush1.msra.mxu0 %v222
        %282 = vmatprep.subr.mxu0 0.0
        %283 = vmatpush1.msra.mxu0 %v223
        %284 = vmatprep.subr.mxu0 0.0
        %285 = vmatpush1.msra.mxu0 %v224
        %286 = vmatprep.subr.mxu0 0.0
        %287 = vmatpush1.msra.mxu0 %v225
        %288 = vmatprep.subr.mxu0 0.0
        %289 = vmatpush1.msra.mxu0 %v226
        %290 = vmatprep.subr.mxu0 0.0
        %291 = vmatpush1.msra.mxu0 %v227
        %292 = vmatprep.subr.mxu0 0.0
        %293 = vmatpush1.msra.mxu0 %v228
        %294 = vmatprep.subr.mxu0 0.0
        %295 = vmatpush1.msra.mxu0 %v229
        %296 = vmatprep.subr.mxu0 0.0
        %297 = vmatpush1.msra.mxu0 %v230
        %298 = vmatprep.subr.mxu0 0.0
        %299 = vmatpush1.msra.mxu0 %v231
        %300 = vmatprep.subr.mxu0 0.0
        %301 = vmatpush1.msra.mxu0 %v232
        %302 = vmatprep.subr.mxu0 0.0
        %303 = vmatpush1.msra.mxu0 %v233
        %304 = vmatprep.subr.mxu0 0.0
        %305 = vmatpush1.msra.mxu0 %v234
        %306 = vmatprep.subr.mxu0 0.0
        %307 = vmatpush1.msra.mxu0 %v235
        %308 = vmatprep.subr.mxu0 0.0
        %309 = vmatpush1.msra.mxu0 %v236
        %310 = vmatprep.subr.mxu0 0.0
        %311 = vmatpush1.msra.mxu0 %v237
        %312 = vmatprep.subr.mxu0 0.0
        %313 = vmatpush1.msra.mxu0 %v238
        %314 = vmatprep.subr.mxu0 0.0
        %315 = vmatpush1.msra.mxu0 %v239
        %316 = vmatprep.subr.mxu0 0.0
        %317 = vmatpush1.msra.mxu0 %v240
        %318 = vmatprep.subr.mxu0 0.0
        %319 = vmatpush1.msra.mxu0 %v241
        %320 = vmatprep.subr.mxu0 0.0
        %321 = vmatpush1.msra.mxu0 %v242
        %322 = vmatprep.subr.mxu0 0.0
        %323 = vmatpush1.msra.mxu0 %v243
        %324 = vmatprep.subr.mxu0 0.0
        %325 = vmatpush1.msra.mxu0 %v244
        %326 = vmatprep.subr.mxu0 0.0
        %327 = vmatpush1.msra.mxu0 %v245
        %328 = vmatprep.subr.mxu0 0.0
        %329 = vmatpush1.msra.mxu0 %v246
        %330 = vmatprep.subr.mxu0 0.0
        %331 = vmatpush1.msra.mxu0 %v247
        %332 = vmatprep.subr.mxu0 0.0
        %333 = vmatpush1.msra.mxu0 %v248
        %334 = vmatprep.subr.mxu0 0.0
        %335 = vmatpush1.msra.mxu0 %v249
        %336 = vmatprep.subr.mxu0 0.0
        %337 = vmatpush1.msra.mxu0 %v250
        %338 = vmatprep.mubr.f32.mxu0 %v215
        %339 = vmatmul.mubr.f32.gmra.mrb[0].mxu0 %v213
        %v340 = vpop.f32.mrb[0].mxu0
        %v341 = vadd.f32 %v272, %v340
        %v342 = vpop.f32.mrb[0].mxu0
        %343 = vmatprep.mubr.f32.mxu0 %v216
        %344 = vmatmul.mubr.f32.gmra.mrb[0].mxu0 %v214
        %v345 = vpop.f32.mrb[0].mxu0
        %v346 = vadd.f32 %v272, %v345
        %v347 = vpop.f32.mrb[0].mxu0
        %348 = vdwg.mxu0
        %349 = vmatprep.subr.mxu0 0.0
        %350 = vmatpush1.msra.mxu0 %v251
        %351 = vmatprep.subr.mxu0 0.0
        %352 = vmatpush1.msra.mxu0 %v252
        %353 = vmatprep.subr.mxu0 0.0
        %354 = vmatpush1.msra.mxu0 %v253
        %355 = vmatprep.subr.mxu0 0.0
        %356 = vmatpush1.msra.mxu0 %v254
        %357 = vmatprep.subr.mxu0 0.0
        %358 = vmatpush1.msra.mxu0 %v255
        %359 = vmatprep.subr.mxu0 0.0
        %360 = vmatpush1.msra.mxu0 %v256
        %361 = vmatprep.subr.mxu0 0.0
        %362 = vmatpush1.msra.mxu0 %v257
        %363 = vmatprep.subr.mxu0 0.0
        %364 = vmatpush1.msra.mxu0 %v258
        %365 = vmatprep.subr.mxu0 0.0
        %366 = vmatpush1.msra.mxu0 %v259
        %367 = vmatprep.subr.mxu0 0.0
        %368 = vmatpush1.msra.mxu0 %v260
        %369 = vmatprep.subr.mxu0 0.0
        %370 = vmatpush1.msra.mxu0 %v261
        %371 = vmatprep.subr.mxu0 0.0
        %372 = vmatpush1.msra.mxu0 %v262
        %373 = vmatprep.subr.mxu0 0.0
        %374 = vmatpush1.msra.mxu0 %v263
        %375 = vmatprep.subr.mxu0 0.0
        %376 = vmatpush1.msra.mxu0 %v264
        %377 = vmatprep.subr.mxu0 0.0
        %378 = vmatpush1.msra.mxu0 %v265
        %379 = vmatprep.subr.mxu0 0.0
        %380 = vmatpush1.msra.mxu0 %v266
        %381 = vmatprep.subr.mxu0 0.0
        %382 = vmatpush1.msra.mxu0 0.0
        %383 = vmatprep.subr.mxu0 0.0
        %384 = vmatpush1.msra.mxu0 0.0
        %385 = vmatprep.subr.mxu0 0.0
        %386 = vmatpush1.msra.mxu0 0.0
        %387 = vmatprep.subr.mxu0 0.0
        %388 = vmatpush1.msra.mxu0 0.0
        %389 = vmatprep.subr.mxu0 0.0
        %390 = vmatpush1.msra.mxu0 0.0
        %391 = vmatprep.subr.mxu0 0.0
        %392 = vmatpush1.msra.mxu0 0.0
        %393 = vmatprep.subr.mxu0 0.0
        %394 = vmatpush1.msra.mxu0 0.0
        %395 = vmatprep.subr.mxu0 0.0
        %396 = vmatpush1.msra.mxu0 0.0
        %397 = vmatprep.subr.mxu0 0.0
        %398 = vmatpush1.msra.mxu0 0.0
        %399 = vmatprep.subr.mxu0 0.0
        %400 = vmatpush1.msra.mxu0 0.0
        %401 = vmatprep.subr.mxu0 0.0
        %402 = vmatpush1.msra.mxu0 0.0
        %403 = vmatprep.subr.mxu0 0.0
        %404 = vmatpush1.msra.mxu0 0.0
        %405 = vmatprep.subr.mxu0 0.0
        %406 = vmatpush1.msra.mxu0 0.0
        %407 = vmatprep.subr.mxu0 0.0
        %408 = vmatpush1.msra.mxu0 0.0
        %409 = vmatprep.subr.mxu0 0.0
        %410 = vmatpush1.msra.mxu0 0.0
        %411 = vmatprep.subr.mxu0 0.0
        %412 = vmatpush1.msra.mxu0 0.0
        %413 = vmatprep.mubr.f32.mxu0 0.0
        %414 = vmatmul.mubr.f32.gmra.mrb[0].mxu0 %v217
        %v415 = vpop.f32.mrb[0].mxu0
        %v416 = vadd.f32 %v341, %v415
        %v417 = vpop.f32.mrb[0].mxu0
        %418 = vmatprep.mubr.f32.mxu0 0.0
        %419 = vmatmul.mubr.f32.gmra.mrb[0].mxu0 %v218
        %v420 = vpop.f32.mrb[0].mxu0
        %v421 = vadd.f32 %v346, %v420
        %v422 = vpop.f32.mrb[0].mxu0
        %423 = vdwg.mxu0
        %v424 = vmul.f32 %v416, 0.5
        %v425 = vmul.f32 %v421, 0.5
        %v426 = vmul.f32 %v416, 0.70710677
        %v427 = vmul.f32 %v421, 0.70710677
        %v428 = verf.f32.pop %v426
        %v429 = verf.f32.pop %v427
        %v430 = vadd.f32 %v428, 1.0
        %v431 = vadd.f32 %v429, 1.0
        %v432 = vmul.f32 %v424, %v430
        %v433 = vmul.f32 %v425, %v431
        %v434 = vadd.f32 %v215, %v432
        %v435 = vadd.f32 %v216, %v433
        %436 = vst [vmem:[%s202] sm:$0xff] %v434
        %437 = vst [vmem:[%s202 + $0x8] sm:$0xff] %v435
        %s438 = sand.u32 %s110, 1
        %s439 = scalar_lea.sflag [#allocation4], %s438
        %s440 = sand.u32 %s110, 1
        %s441 = smul.addr %s440, 16
        %s442 = scalar_lea.vmem [#allocation5], %s441
        // Predicated region
        $region37: #{tpu_custom_call.1} parent=31 // pred_check
          %p443 = pneg %p120
        $region38: #{tpu_custom_call.1} parent=31 // pred_check_branch
          %445 = sbr.rel (%p443) target = $region40
        $region39: #{tpu_custom_call.1} parent=31 // pred_region
          %s446 = smul.u32 2, %s23
          %s448 = ssub.s32 256, 256
          %449 = vsyncadd %s439, %s448
          %s450 = smul.addr %s22, 6
          %s451 = sadd.s32 %s446, %s450
          %s452 = smul.addr %s451, 128
          %s453 = scalar_lea.hbm %s3, %s452
          %s454 = sshll.u32 %s442, 4
          %s455 = int_to_ptr.vmem [resolvable:$true] %s454
          %460 = dma.vmem_to_hbm [thread:$0]  %s455, 256, %s453, %s439, 128, 128, 8
        $region40: #{tpu_custom_call.1} parent=31 // pred_fallthru
          _
      $region32: #{tpu_custom_call.1} parent=5 // pred_fallthru
        _
      %p461 = scmp.le.s32.totalorder 2, %s13
      // Predicated region
      $region41: #{tpu_custom_call.1} parent=5 // pred_check
        %p462 = pneg %p461
      $region42: #{tpu_custom_call.1} parent=5 // pred_check_branch
        %464 = sbr.rel (%p462) target = $region44
      $region43: #{tpu_custom_call.1} parent=5 // pred_region
        %s465 = ssub.s32 %s13, 2
        // Predicated region
        $region45: #{tpu_custom_call.1} parent=43 // pred_check
          %p466 = pneg %p126
        $region46: #{tpu_custom_call.1} parent=43 // pred_check_branch
          %468 = sbr.rel (%p466) target = $region48
        $region47: #{tpu_custom_call.1} parent=43 // pred_region
          %s469 = sand.u32 %s111, 1
          %s470 = scalar_lea.sflag [#allocation4], %s469
          %s471 = sand.u32 %s111, 1
          %s472 = smul.addr %s471, 16
          %s473 = scalar_lea.vmem [#allocation5], %s472
          %474 = dma.done %s470, 256
        $region48: #{tpu_custom_call.1} parent=43 // pred_fallthru
          _
      $region44: #{tpu_custom_call.1} parent=5 // pred_fallthru
        _
    $region6: #{tpu_custom_call.1} parent=1 // loop_footer
      %s17 = sadd.s32 1, %s13
    $region7: #{tpu_custom_call.1} parent=1 // loop_footer_branch
      %12 = sbr.rel target = $region3
    $region8: #{tpu_custom_call.1} parent=1 // loop_exit
      _
    %475 = vsyncpa [#allocation3], 1
    %s476 = scalar_lea.sflag [#allocation3], 1
    %477 = vsyncpa %s476, 1
    %478 = vsyncpa [#allocation4], 1
    %s479 = scalar_lea.sflag [#allocation4], 1
    %480 = vsyncpa %s479, 1

</llo_original>
